<compile_context>
chip_gen: v5e
topology: v5e:2x2
jax: 0.10.0
libtpu: 0.0.40
codegen_flags: <defaults>
</compile_context>

<pallas_src>
import jax
import jax.numpy as jnp
from jax.experimental import pallas as pl
from jax.experimental.pallas import tpu as pltpu

LANE = 128
_MiB = 1 << 20
# Budget against the tightest generation (v7x: 64 MiB physical VMEM, 32 MiB
# default scoped).  48 MiB scoped limit is safe on v5e/v6e/v7x.
_VMEM_LIMIT_BYTES = 48 * _MiB
_RESIDENT_H_BUDGET = 40 * _MiB


def _round_up(x, m):
    return ((x + m - 1) // m) * m


def _pad2d(a, rows, cols):
    return jnp.pad(a, ((0, rows - a.shape[0]), (0, cols - a.shape[1])))


# ----------------------------- kernels -------------------------------------


def _xw_kernel(x_ref, w_ref, o_ref):
    # Small dense feature-transform matmul (K = multiple of 128 lanes), hoisted
    # out of the A @ H reduction loop; W stays resident across row tiles.
    o_ref[...] = jnp.dot(
        x_ref[...], w_ref[...], preferred_element_type=jnp.float32
    ).astype(o_ref.dtype)


def _make_agg_kernel(activation, n_valid_cols, resident_tk):
    """acc += A_tile @ H_tile over K tiles; bias + activation on the last K step.

    resident_tk is None  -> h_ref is a streamed (tk, fp) block.
    resident_tk is an int -> h_ref is the full (n_pad, fp) VMEM-resident H;
                             slice the k-th (tk, fp) chunk inside the kernel.
    """

    def kernel(a_ref, h_ref, b_ref, o_ref, acc_ref):
        k = pl.program_id(1)

        @pl.when(k == 0)
        def _():
            acc_ref[...] = jnp.zeros_like(acc_ref)

        if resident_tk is None:
            h_blk = h_ref[...]
        else:
            off = pl.multiple_of(k * resident_tk, resident_tk)
            h_blk = h_ref[pl.ds(off, resident_tk), :]

        acc_ref[...] += jnp.dot(a_ref[...], h_blk, preferred_element_type=jnp.float32)

        @pl.when(k == pl.num_programs(1) - 1)
        def _():
            h = acc_ref[...] + b_ref[...]  # f32 elementwise (v5e has no bf16 VPU)
            if activation == "relu":
                o_ref[...] = jnp.maximum(h, 0.0).astype(o_ref.dtype)
            else:  # softmax over the feature axis; mask padded lanes
                col = jax.lax.broadcasted_iota(jnp.int32, h.shape, 1)
                h = jnp.where(col < n_valid_cols, h, -1e30)
                m = jnp.max(h, axis=1, keepdims=True)
                e = jnp.exp(h - m)
                denom = jnp.sum(e, axis=1, keepdims=True)
                # exact divide (once per (tm, fp) tile) for torch.softmax parity
                o_ref[...] = (e / denom).astype(o_ref.dtype)

    return kernel


# ----------------------------- pallas wrappers ------------------------------


def _ft_row_tile(n_pad):
    # The feature transform is pure per-step overhead (tiny tiles), so use the
    # largest row tile that divides n_pad.
    for t in (2048, 1024, 512):
        if n_pad % t == 0:
            return t
    return n_pad


def _feature_transform(x_bf16, w_bf16):
    n_pad, f_in = x_bf16.shape
    f_out = w_bf16.shape[1]
    tm = _ft_row_tile(n_pad)
    return pl.pallas_call(
        _xw_kernel,
        out_shape=jax.ShapeDtypeStruct((n_pad, f_out), jnp.bfloat16),
        grid_spec=pltpu.PrefetchScalarGridSpec(
            num_scalar_prefetch=0,
            grid=(n_pad // tm,),
            in_specs=[
                pl.BlockSpec((tm, f_in), lambda i: (i, 0)),
                pl.BlockSpec((f_in, f_out), lambda i: (0, 0)),
            ],
            out_specs=pl.BlockSpec((tm, f_out), lambda i: (i, 0)),
        ),
        compiler_params=pltpu.CompilerParams(dimension_semantics=("parallel",)),
        cost_estimate=pl.CostEstimate(
            flops=2 * n_pad * f_in * f_out,
            transcendentals=0,
            bytes_accessed=2 * (x_bf16.size + w_bf16.size + n_pad * f_out),
        ),
    )(x_bf16, w_bf16)


def _aggregate(a_bf16, h_bf16, bias_f32, activation, n_valid_cols, out_dtype, tm, tk):
    n_pad = a_bf16.shape[0]
    fp = h_bf16.shape[1]
    out_itemsize = jnp.dtype(out_dtype).itemsize

    # VMEM plan (bytes): double-buffered A tile + H (resident plan counts two
    # buffers even though the constant index_map means it is DMA'd only once)
    # + f32 accumulator + double-buffered output tile.
    a_tile_bytes = 2 * (tm * tk * 2)
    acc_bytes = tm * fp * 4
    out_tile_bytes = 2 * (tm * fp * out_itemsize)
    h_full_bytes = 2 * (n_pad * fp * 2)

    h_resident = (
        a_tile_bytes + h_full_bytes + acc_bytes + out_tile_bytes
    ) <= _RESIDENT_H_BUDGET

    if h_resident:
        h_spec = pl.BlockSpec((n_pad, fp), lambda i, k: (0, 0))
        h_hbm_bytes = n_pad * fp * 2  # fetched once
        kernel = _make_agg_kernel(activation, n_valid_cols, tk)
    else:
        # Fallback for very large graphs: stream (tk, fp) H blocks; the large tm
        # keeps the re-streaming overhead at fp/tm of the A traffic.
        h_spec = pl.BlockSpec((tk, fp), lambda i, k: (k, 0))
        h_hbm_bytes = (n_pad // tm) * n_pad * fp * 2
        kernel = _make_agg_kernel(activation, n_valid_cols, None)

    return pl.pallas_call(
        kernel,
        out_shape=jax.ShapeDtypeStruct((n_pad, fp), out_dtype),
        grid_spec=pltpu.PrefetchScalarGridSpec(
            num_scalar_prefetch=0,
            grid=(n_pad // tm, n_pad // tk),
            in_specs=[
                pl.BlockSpec((tm, tk), lambda i, k: (i, k)),
                h_spec,
                pl.BlockSpec((1, fp), lambda i, k: (0, 0)),
            ],
            out_specs=pl.BlockSpec((tm, fp), lambda i, k: (i, 0)),
            scratch_shapes=[pltpu.VMEM((tm, fp), jnp.float32)],
        ),
        compiler_params=pltpu.CompilerParams(
            dimension_semantics=("parallel", "arbitrary"),
            vmem_limit_bytes=_VMEM_LIMIT_BYTES,
        ),
        cost_estimate=pl.CostEstimate(
            flops=2 * n_pad * n_pad * fp,
            transcendentals=(n_pad * fp if activation == "softmax" else 0),
            bytes_accessed=a_bf16.size * 2 + h_hbm_bytes + n_pad * fp * out_itemsize,
        ),
    )(a_bf16, h_bf16, bias_f32)


def _pick_tiles(n):
    # The A @ H pass is HBM-bound: use 1-2 MiB bf16 A tiles to amortize the
    # ~0.35 us per-grid-step overhead.  Keep n_pad // tm a multiple of 4 on the
    # large path so v7x's two TensorCores stay balanced on the "parallel" axis.
    if n <= 1024:
        n_pad = _round_up(n, 8)
        tm = tk = n_pad  # single tile per axis (full-extent blocks are legal)
    else:
        tm = 512
        tk = 2048 if n >= 8192 else 1024
        n_pad = _round_up(n, max(4 * tm, tk))
    return n_pad, tm, tk


# ----------------------------- plain-JAX glue --------------------------------


def build_normalized_adjacency(
    edge_index, edge_weight, num_nodes, n_pad=None, out_dtype=jnp.float32
):
    """Dense D^-1/2 (A + I) D^-1/2 matching PyG gcn_norm, built padded in one pass.

    Self-loops follow add_remaining_self_loops semantics: a weight-1 self loop
    is added only to nodes that do not already have one.
    """
    # TODO(synk): densifying edge_index is O(N^2) HBM; very large graphs need a
    # blocked-sparse (CSR + scalar-prefetch index_map) adjacency instead.
    n_pad = num_nodes if n_pad is None else n_pad
    src = edge_index[0]
    dst = edge_index[1]
    adj = jnp.zeros((n_pad, n_pad), jnp.float32)
    adj = adj.at[dst, src].add(edge_weight.astype(jnp.float32))  # A[target, source]
    idx = jnp.arange(num_nodes)
    diag = adj[idx, idx]
    adj = adj.at[idx, idx].add(jnp.where(diag == 0.0, 1.0, 0.0))
    deg = jnp.sum(adj, axis=1)
    dinv = jnp.where(deg > 0, jax.lax.rsqrt(deg), 0.0)
    # normalize + cast fuse into a single elementwise pass under jit
    return (dinv[:, None] * adj * dinv[None, :]).astype(out_dtype)


def gcn_forward(x, edge_index, edge_weight, params):
    n, f_in = x.shape
    f_hid = params["w1"].shape[1]
    f_out = params["w2"].shape[1]

    n_pad, tm, tk = _pick_tiles(n)
    f_in_p = _round_up(f_in, LANE)
    f_hid_p = _round_up(f_hid, LANE)
    f_out_p = _round_up(f_out, LANE)

    # bf16 MXU inputs (f32 accumulation inside the kernels), lane-padded.
    a_bf16 = build_normalized_adjacency(
        edge_index, edge_weight, n, n_pad=n_pad, out_dtype=jnp.bfloat16
    )
    x_bf16 = _pad2d(x.astype(jnp.float32), n_pad, f_in_p).astype(jnp.bfloat16)
    w1 = _pad2d(params["w1"], f_in_p, f_hid_p).astype(jnp.bfloat16)
    w2 = _pad2d(params["w2"], f_hid_p, f_out_p).astype(jnp.bfloat16)
    b1 = _pad2d(params["b1"].reshape(1, -1), 1, f_hid_p).astype(jnp.float32)
    b2 = _pad2d(params["b2"].reshape(1, -1), 1, f_out_p).astype(jnp.float32)

    # --- GCNConv #1: H1 = relu(A_hat @ (X W1) + b1) ---
    xw1 = _feature_transform(x_bf16, w1)
    h1 = _aggregate(a_bf16, xw1, b1, "relu", f_hid, jnp.bfloat16, tm, tk)

    # --- Dropout ---
    # TODO(synk): F.dropout(training=True) is stochastic; eval-mode identity here.
    #             Training parity would use pltpu.prng_seed + prng_random_bits.

    # --- GCNConv #2 + softmax(dim=1): OUT = softmax(A_hat @ (H1 W2) + b2) ---
    h1w2 = _feature_transform(h1, w2)
    out = _aggregate(a_bf16, h1w2, b2, "softmax", f_out, jnp.float32, tm, tk)

    return out[:n, :f_out]


def init_params(key, in_feature, out_feature):
    k1, k2 = jax.random.split(key)

    def glorot(k, fan_in, fan_out):
        lim = jnp.sqrt(6.0 / (fan_in + fan_out))
        return jax.random.uniform(k, (fan_in, fan_out), jnp.float32, -lim, lim)

    return {
        "w1": glorot(k1, in_feature, in_feature),
        "b1": jnp.zeros((in_feature,), jnp.float32),
        "w2": glorot(k2, in_feature, out_feature),
        "b2": jnp.zeros((out_feature,), jnp.float32),
    }


if __name__ == "__main__":
    key = jax.random.PRNGKey(0)
    kx, ke, kw, kp = jax.random.split(key, 4)

    num_nodes = 16
    in_feature = 8
    out_feature = 4
    num_edges = 32

    x = jax.random.normal(kx, (num_nodes, in_feature), jnp.float32)
    edge_index = jax.random.randint(ke, (2, num_edges), 0, num_nodes, jnp.int32)
    edge_weight = jax.random.uniform(kw, (num_edges,), jnp.float32, 0.1, 1.0)

    params = init_params(kp, in_feature, out_feature)

    out = gcn_forward(x, edge_index, edge_weight, params)
    jax.block_until_ready(out)

    # pure-JAX f32 reference (eval-mode dropout)
    a_ref = build_normalized_adjacency(edge_index, edge_weight, num_nodes)
    h_ref = jnp.maximum(a_ref @ (x @ params["w1"]) + params["b1"], 0.0)
    ref = jax.nn.softmax(a_ref @ (h_ref @ params["w2"]) + params["b2"], axis=1)

    assert out.shape == (num_nodes, out_feature)
    assert bool(jnp.all(jnp.isfinite(out)))
    # softmax rows sum to 1 (exact divide in epilogue; bf16 matmul inputs)
    assert jnp.allclose(jnp.sum(out, axis=1), 1.0, atol=1e-2)
    assert jnp.allclose(out, ref, atol=5e-2)
    print("KERNEL_OK")
</pallas_src>

<mosaic_0001>
module attributes {stable_mosaic.version = 11 : i64} {
  func.func @_xw_kernel(%arg0: i32, %arg1: memref<16x128xbf16, #tpu.memory_space<vmem>>, %arg2: memref<128x128xbf16, #tpu.memory_space<vmem>>, %arg3: memref<16x128xbf16, #tpu.memory_space<vmem>>) attributes {dimension_semantics = [#tpu.dimension_semantics<parallel>], iteration_bounds = array<i64: 1>, scalar_prefetch = 0 : i64, scratch_operands = 0 : i64, tpu.core_type = #tpu.core_type<tc>, window_params = [{transform_indices = @transform_0, window_bounds = array<i64: 16, 128>}, {pipeline_mode = #tpu.pipeline_mode<synchronous>, transform_indices = @transform_1, window_bounds = array<i64: 128, 128>}, {transform_indices = @transform_2, window_bounds = array<i64: 16, 128>}]} {
    %c0 = arith.constant 0 : index
    %c0_0 = arith.constant 0 : index
    %0 = vector.load %arg1[%c0, %c0_0] : memref<16x128xbf16, #tpu.memory_space<vmem>>, vector<16x128xbf16>
    %c0_1 = arith.constant 0 : index
    %c0_2 = arith.constant 0 : index
    %1 = vector.load %arg2[%c0_1, %c0_2] : memref<128x128xbf16, #tpu.memory_space<vmem>>, vector<128x128xbf16>
    %cst = arith.constant dense<0.000000e+00> : vector<16x128xf32>
    %2 = tpu.matmul %0, %1, %cst {dimension_numbers = #tpu.dot_dimension_numbers<[1], [0], [0], [1], [0, 0, 1, 1], [], []>} : vector<16x128xbf16>, vector<128x128xbf16>, vector<16x128xf32> -> vector<16x128xf32>
    %3 = arith.truncf %2 : vector<16x128xf32> to vector<16x128xbf16>
    %c0_3 = arith.constant 0 : index
    %c0_4 = arith.constant 0 : index
    %4 = vector.load %arg3[%c0_3, %c0_4] : memref<16x128xbf16, #tpu.memory_space<vmem>>, vector<16x128xbf16>
    tpu.vector_store %arg3[%c0_3, %c0_4], %3 {strides = array<i32>} : memref<16x128xbf16, #tpu.memory_space<vmem>>, vector<16x128xbf16>,
    return
  }
  func.func @transform_0(%arg0: i32) -> (i32, i32) {
    %c0_i32 = arith.constant 0 : i32
    %c0_i32_0 = arith.constant 0 : i32
    return %arg0, %c0_i32 : i32, i32
  }
  func.func @transform_1(%arg0: i32) -> (i32, i32) {
    %c0_i32 = arith.constant 0 : i32
    %c0_i32_0 = arith.constant 0 : i32
    %c0_i32_1 = arith.constant 0 : i32
    return %c0_i32, %c0_i32_0 : i32, i32
  }
  func.func @transform_2(%arg0: i32) -> (i32, i32) {
    %c0_i32 = arith.constant 0 : i32
    %c0_i32_0 = arith.constant 0 : i32
    return %arg0, %c0_i32 : i32, i32
  }
}

</mosaic_0001>

<llo_original>
// kernel: tpu_custom_call.1
$region0: #{tpu_custom_call.1}
  #allocation0 [shape = 'u32[]', space=smem, size = 0x4, offset = 0x4, fixed_abs, tag = 'smem constant byte address 0x4 - core index']
  #allocation1 [shape = 'u32[72,128]{1,0:T(1,128)}', space=vmem, size = 0x9000, scoped, tag = 'internal scratch']
  %s0 = inlined_call_operand.hbm [shape: bf16[16,128], index: 0, kind: input, shape index: {}]
  %s1 = inlined_call_operand.hbm [shape: bf16[128,128], index: 1, kind: input, shape index: {}]
  %s2 = inlined_call_operand.hbm [shape: bf16[16,128], index: 2, kind: output, shape index: {}]
  %s3 = sld [smem:[#allocation0]]
  $region26: #{tpu_custom_call.1} parent=0
    _
  %s5 = ssub.s32 1, %s3
  %s6 = scalar_select 0, %s5, %s3
  $region1: #{tpu_custom_call.1} parent=0
    #allocation2 [shape = 'u8[4096]{0}', space=vmem, size = 0x1000, scoped, tag = 'input window, operand 0, single buffered']
    #allocation3 [shape = 's32[1]{0}', space=sflag, size = 0x4, scoped, tag = 'scoped memory for tpu_custom_call.1']
    #allocation4 [shape = 's32[1]{0}', space=sflag, size = 0x4, scoped, tag = 'scoped memory for tpu_custom_call.1']
    #allocation5 [shape = 'u8[32768]{0}', space=vmem, size = 0x8000, scoped, tag = 'input window, operand 1, single buffered']
    #allocation6 [shape = 's32[1]{0}', space=sflag, size = 0x4, scoped, tag = 'scoped memory for tpu_custom_call.1']
    #allocation7 [shape = 'u8[4096]{0}', space=vmem, size = 0x1000, scoped, tag = 'output window, operand 0, single buffered']
    %7 = vsyncpa [#allocation3], 0
    %8 = vsyncpa [#allocation6], 0
    %9 = vsyncpa [#allocation4], 0
    // Predicated region
    $region2: #{tpu_custom_call.1} parent=1 // pred_check
      _
    $region3: #{tpu_custom_call.1} parent=1 // pred_check_branch
      %11 = sbr.rel (0) target = $region5
    $region4: #{tpu_custom_call.1} parent=1 // pred_region
      %13 = vsyncadd [#allocation3], 0
      %s14 = sshll.u32 %s0, 4
      %s15 = int_to_ptr.hbm [resolvable:$true] %s14
      %s16 = sshll.u32 [#allocation2], 4
      %s17 = int_to_ptr.vmem [resolvable:$true] %s16
      %22 = dma.hbm_to_vmem [thread:$0]  %s15, 128, %s17, [#allocation3], 64, 64, 4
    $region5: #{tpu_custom_call.1} parent=1 // pred_fallthru
      _
    // Predicated region
    $region6: #{tpu_custom_call.1} parent=1 // pred_check
      _
    $region7: #{tpu_custom_call.1} parent=1 // pred_check_branch
      %24 = sbr.rel (0) target = $region9
    $region8: #{tpu_custom_call.1} parent=1 // pred_region
      %26 = vsyncadd [#allocation6], 0
      %s27 = sshll.u32 %s1, 4
      %s28 = int_to_ptr.hbm [resolvable:$true] %s27
      %s29 = sshll.u32 [#allocation5], 4
      %s30 = int_to_ptr.vmem [resolvable:$true] %s29
      %35 = dma.hbm_to_vmem [thread:$0]  %s28, 1024, %s30, [#allocation6], 64, 64, 4
    $region9: #{tpu_custom_call.1} parent=1 // pred_fallthru
      _
    // Predicated region
    $region10: #{tpu_custom_call.1} parent=1 // pred_check
      _
    $region11: #{tpu_custom_call.1} parent=1 // pred_check_branch
      %37 = sbr.rel (0) target = $region13
    $region12: #{tpu_custom_call.1} parent=1 // pred_region
      %39 = dma.done [#allocation3], 128
    $region13: #{tpu_custom_call.1} parent=1 // pred_fallthru
      _
    // Predicated region
    $region14: #{tpu_custom_call.1} parent=1 // pred_check
      _
    $region15: #{tpu_custom_call.1} parent=1 // pred_check_branch
      %41 = sbr.rel (0) target = $region17
    $region16: #{tpu_custom_call.1} parent=1 // pred_region
      %43 = dma.done [#allocation6], 1024
    $region17: #{tpu_custom_call.1} parent=1 // pred_fallthru
      _
    %v44 = vld [vmem:[#allocation2] sm:$0xf]
    %v45 = vld [vmem:[#allocation2 + $0x4] sm:$0xf]
    %v46 = vld [vmem:[#allocation5] sm:$0xf]
    %v47 = vld [vmem:[#allocation5 + $0x4] sm:$0xf]
    %v48 = vld [vmem:[#allocation5 + $0x8] sm:$0xf]
    %v49 = vld [vmem:[#allocation5 + $0xc] sm:$0xf]
    %v50 = vld [vmem:[#allocation5 + $0x10] sm:$0xf]
    %v51 = vld [vmem:[#allocation5 + $0x14] sm:$0xf]
    %v52 = vld [vmem:[#allocation5 + $0x18] sm:$0xf]
    %v53 = vld [vmem:[#allocation5 + $0x1c] sm:$0xf]
    %v54 = vld [vmem:[#allocation5 + $0x20] sm:$0xf]
    %v55 = vld [vmem:[#allocation5 + $0x24] sm:$0xf]
    %v56 = vld [vmem:[#allocation5 + $0x28] sm:$0xf]
    %v57 = vld [vmem:[#allocation5 + $0x2c] sm:$0xf]
    %v58 = vld [vmem:[#allocation5 + $0x30] sm:$0xf]
    %v59 = vld [vmem:[#allocation5 + $0x34] sm:$0xf]
    %v60 = vld [vmem:[#allocation5 + $0x38] sm:$0xf]
    %v61 = vld [vmem:[#allocation5 + $0x3c] sm:$0xf]
    %v64 = vunpack.c.l.b16 %v44
    %v65 = vunpack.c.l.b16 %v45
    %v66 = vpack.c.b16 %v65, %v64
    %v84 = vunpack.c.l.b16 %v46
    %v85 = vunpack.c.l.b16 %v47
    %v86 = vunpack.c.l.b16 %v48
    %v87 = vunpack.c.l.b16 %v49
    %v88 = vunpack.c.l.b16 %v50
    %v89 = vunpack.c.l.b16 %v51
    %v90 = vunpack.c.l.b16 %v52
    %v91 = vunpack.c.l.b16 %v53
    %v92 = vunpack.c.l.b16 %v54
    %v93 = vunpack.c.l.b16 %v55
    %v94 = vunpack.c.l.b16 %v56
    %v95 = vunpack.c.l.b16 %v57
    %v96 = vunpack.c.l.b16 %v58
    %v97 = vunpack.c.l.b16 %v59
    %v98 = vunpack.c.l.b16 %v60
    %v99 = vunpack.c.l.b16 %v61
    %v100 = vpack.c.b16 %v85, %v84
    %v101 = vpack.c.b16 %v87, %v86
    %v102 = vpack.c.b16 %v89, %v88
    %v103 = vpack.c.b16 %v91, %v90
    %v104 = vpack.c.b16 %v93, %v92
    %v105 = vpack.c.b16 %v95, %v94
    %v106 = vpack.c.b16 %v97, %v96
    %v107 = vpack.c.b16 %v99, %v98
    %116 = vmatpush.bf16.msra.mxu0 %v107
    %117 = vmatpush.bf16.msra.mxu0 %v106
    %118 = vmatpush.bf16.msra.mxu0 %v105
    %119 = vmatpush.bf16.msra.mxu0 %v104
    %120 = vmatpush.bf16.msra.mxu0 %v103
    %121 = vmatpush.bf16.msra.mxu0 %v102
    %122 = vmatpush.bf16.msra.mxu0 %v101
    %123 = vmatpush.bf16.msra.mxu0 %v100
    %124 = vmatmul.bf16.gmra.mxu0 %v66
    %v125 = vpop.f32.mrf.mxu0
    %v126 = vadd.f32 0.0, %v125
    %v127 = vpop.f32.mrf.mxu0
    %v128 = vadd.f32 0.0, %v127
    %129 = vdwg.mxu0
    %v130 = vpack.c.bf16 %v126, %v126
    %v131 = vpack.c.bf16 %v128, %v128
    %132 = vst [vmem:[#allocation7] sm:$0xf] %v130
    %133 = vst [vmem:[#allocation7 + $0x4] sm:$0xf] %v131
    // Predicated region
    $region18: #{tpu_custom_call.1} parent=1 // pred_check
      _
    $region19: #{tpu_custom_call.1} parent=1 // pred_check_branch
      %135 = sbr.rel (0) target = $region21
    $region20: #{tpu_custom_call.1} parent=1 // pred_region
      %137 = vsyncadd [#allocation4], 0
      %s138 = sshll.u32 [#allocation7], 4
      %s139 = int_to_ptr.vmem [resolvable:$true] %s138
      %s140 = sshll.u32 %s2, 4
      %s141 = int_to_ptr.hbm [resolvable:$true] %s140
      %146 = dma.vmem_to_hbm [thread:$0]  %s139, 128, %s141, [#allocation4], 64, 64, 4
    $region21: #{tpu_custom_call.1} parent=1 // pred_fallthru
      _
    // Predicated region
    $region22: #{tpu_custom_call.1} parent=1 // pred_check
      _
    $region23: #{tpu_custom_call.1} parent=1 // pred_check_branch
      %148 = sbr.rel (0) target = $region25
    $region24: #{tpu_custom_call.1} parent=1 // pred_region
      %150 = dma.done [#allocation4], 128
    $region25: #{tpu_custom_call.1} parent=1 // pred_fallthru
      _
    %151 = vsyncpa [#allocation3], 1
    %152 = vsyncpa [#allocation6], 1
    %153 = vsyncpa [#allocation4], 1

</llo_original>
